<compile_context>
chip_gen: v6e
topology: v6e:2x2x1
jax: 0.10.0
libtpu: 0.0.40
codegen_flags: <defaults>
</compile_context>

<pallas_src>
import numpy as np
import jax
import jax.numpy as jnp
from jax import lax
from jax.experimental import pallas as pl
from jax.experimental.pallas import tpu as pltpu


_TARGET_LANES = 1024            # pack narrow images along lanes up to ~1024 cols
_TARGET_BLOCK_ELEMS = 1 << 19   # ~2 MiB f32 per input block per grid step


def _round_up(v, m):
    return (v + m - 1) // m * m


def _grad_loss_kernel(x_ref, y_ref, mask_ref, out_ref):
    x = x_ref[...].astype(jnp.float32)
    y = y_ref[...].astype(jnp.float32)
    th, tc = x.shape

    def sobel(img):
        # Horizontal (lane) +/-1 neighbours via XLU rotates.  Wrap-around
        # positions are masked out later, and the rotate direction only
        # flips the sign of gx / gy, which |.| removes.
        cl = pltpu.roll(img, 1, 1)
        cr = pltpu.roll(img, tc - 1, 1)
        h_diff = cr - cl                    # +/-[-1, 0, 1] horizontally
        h_smooth = (cl + cr) + 2.0 * img    #    [ 1, 2, 1] horizontally
        # Vertical (sublane) +/-1 combines.
        gx = (pltpu.roll(h_diff, 1, 0) + pltpu.roll(h_diff, th - 1, 0)) + 2.0 * h_diff
        gy = pltpu.roll(h_smooth, 1, 0) - pltpu.roll(h_smooth, th - 1, 0)
        return gx, gy

    gxx, gxy = sobel(x)
    gyx, gyy = sobel(y)
    dx = jnp.abs(gxx) - jnp.abs(gyx)
    dy = jnp.abs(gxy) - jnp.abs(gyy)
    d = (dx * dx + dy * dy) * mask_ref[...]   # precomputed 0/1 validity mask

    # Fold the (th, tc) block into one lane-dense (8, 128) partial-sum tile
    # using only VPU vreg adds (no cross-lane/sublane XLU reduce, no scalar
    # splat).  The final reduction happens outside the kernel.
    col = d[:, 0:128]
    for j in range(1, tc // 128):
        col = col + d[:, j * 128:(j + 1) * 128]
    acc = col[0:8, :]
    for i in range(1, th // 8):
        acc = acc + col[i * 8:(i + 1) * 8, :]
    out_ref[0] = acc


def _choose_packing(N, H, W):
    """Pick (k, s): k images packed along lanes, s lane-rows stacked per step."""
    # Lane packing: fill vreg lanes for narrow images, but keep >= 2 grid
    # steps whenever the batch allows (v7x has 2 TensorCores per chip).
    max_k = max(1, _TARGET_LANES // W)
    if N >= 2:
        max_k = min(max_k, N // 2)
    k = 1
    for cand in range(max(1, min(N, max_k)), 0, -1):
        if N % cand == 0:
            k = cand
            break
    g0 = N // k
    c_pad = _round_up(k * W, 128)
    # Sublane stacking: grow the block toward the target size, again keeping
    # >= 2 grid steps when possible.
    max_s = max(1, _TARGET_BLOCK_ELEMS // (H * c_pad))
    if g0 >= 2:
        max_s = min(max_s, g0 // 2)
    s = 1
    for cand in range(max(1, min(g0, max_s)), 0, -1):
        if g0 % cand == 0:
            s = cand
            break
    return k, s


def _vmem_limit_bytes(blk_in_bytes, blk_f32_bytes):
    # 2 inputs x 2 pipeline buffers, resident mask, ~8 live block-sized f32
    # intermediates (compiler-spilled values), output tiles, + 25% headroom.
    need = 2 * 2 * blk_in_bytes + blk_f32_bytes + 8 * blk_f32_bytes + (1 << 20)
    need = int(need * 1.25)
    try:
        phys = int(pltpu.get_tpu_info().vmem_capacity_bytes)
    except Exception:
        phys = 64 * 1024 * 1024           # conservative default (v7x)
    return max(min(need, int(phys * 0.75)), 16 * 1024 * 1024)


@jax.jit
def grad_loss(x, y):
    """Pallas TPU equivalent of grad_loss.forward(x, y) with vis=False.

    x, y: (N, 1, H, W) arrays.  Returns a scalar float32 loss.
    """
    N, C, H, W = x.shape
    assert C == 1, "Sobel weight has in_channels=1 (matches F.conv2d)"
    assert H >= 3 and W >= 3, "need at least a 3x3 image"

    # Keep bf16 in HBM (halves memory-bound traffic on v5e); upcast in-kernel.
    in_dtype = jnp.bfloat16 if x.dtype == jnp.bfloat16 else jnp.float32

    k, s = _choose_packing(N, H, W)
    G = N // (k * s)
    C_real = k * W
    C_pad = _round_up(C_real, 128)
    R_real = s * H
    H_blk = _round_up(R_real, 8)

    # TODO(synk): when k == 1 and s == 1 (large, lane-aligned images) feed the
    # inputs directly (skip the pack/pad HBM round trip) and row-tile very
    # large images with a 2-row halo so blocks also fit v7x's 64 MiB VMEM.
    def pack(a):
        a = a.reshape(G, s, k, H, W).transpose(0, 1, 3, 2, 4)
        a = a.reshape(G, R_real, C_real).astype(in_dtype)
        a = jnp.pad(a, ((0, 0), (0, H_blk - R_real), (0, C_pad - C_real)))
        return a.reshape(G * H_blk, C_pad)

    xp = pack(x.reshape(N, H, W))
    yp = pack(y.reshape(N, H, W))

    # Precomputed validity mask: 1.0 where the centered 3x3 window lies fully
    # inside one real (unpadded) image; 0.0 on image borders, padding, and
    # positions whose window would cross a packed-image boundary or wrap.
    rows = np.arange(H_blk)
    r_valid = (rows < R_real) & ((rows % H) >= 1) & ((rows % H) <= H - 2)
    cols = np.arange(C_pad)
    c_valid = (cols < C_real) & ((cols % W) >= 1) & ((cols % W) <= W - 2)
    mask = jnp.asarray((r_valid[:, None] & c_valid[None, :]).astype(np.float32))

    blk_in_bytes = H_blk * C_pad * np.dtype(in_dtype).itemsize
    blk_f32_bytes = H_blk * C_pad * 4

    partials = pl.pallas_call(
        _grad_loss_kernel,
        out_shape=jax.ShapeDtypeStruct((G, 8, 128), jnp.float32),
        grid=(G,),
        in_specs=[
            pl.BlockSpec((H_blk, C_pad), lambda b: (b, 0)),
            pl.BlockSpec((H_blk, C_pad), lambda b: (b, 0)),
            pl.BlockSpec((H_blk, C_pad), lambda b: (0, 0)),   # resident mask
        ],
        out_specs=pl.BlockSpec((1, 8, 128), lambda b: (b, 0, 0)),
        compiler_params=pltpu.CompilerParams(
            dimension_semantics=("parallel",),
            vmem_limit_bytes=_vmem_limit_bytes(blk_in_bytes, blk_f32_bytes),
        ),
    )(xp, yp, mask)

    denom = jnp.float32(N * (H - 2) * (W - 2))
    return jnp.sum(partials) / denom


def _grad_loss_reference(x, y):
    """Pure-JAX reference using real convs (for correctness check)."""
    kx = jnp.array([[-1.0, 0.0, 1.0], [-2.0, 0.0, 2.0], [-1.0, 0.0, 1.0]],
                   jnp.float32).reshape(1, 1, 3, 3)
    ky = jnp.array([[1.0, 2.0, 1.0], [0.0, 0.0, 0.0], [-1.0, -2.0, -1.0]],
                   jnp.float32).reshape(1, 1, 3, 3)

    def conv(img, w):
        return lax.conv_general_dilated(
            img, w, window_strides=(1, 1), padding="VALID",
            dimension_numbers=("NCHW", "OIHW", "NCHW"))

    gxx, gxy = conv(x, kx), conv(x, ky)
    gyx, gyy = conv(y, kx), conv(y, ky)
    x_diff = jnp.mean((jnp.abs(gxx) - jnp.abs(gyx)) ** 2)
    y_diff = jnp.mean((jnp.abs(gxy) - jnp.abs(gyy)) ** 2)
    return x_diff + y_diff


if __name__ == "__main__":
    key = jax.random.PRNGKey(0)
    kx_, ky_ = jax.random.split(key)
    N, C, H, W = 2, 1, 16, 16
    x = jax.random.normal(kx_, (N, C, H, W), dtype=jnp.float32)
    y = jax.random.normal(ky_, (N, C, H, W), dtype=jnp.float32)

    loss = grad_loss(x, y)
    jax.block_until_ready(loss)

    ref = _grad_loss_reference(x, y)
    jax.block_until_ready(ref)
    assert jnp.allclose(loss, ref, rtol=1e-5, atol=1e-5), (loss, ref)

    print("KERNEL_OK")
</pallas_src>

<mosaic_0001>
module attributes {stable_mosaic.version = 11 : i64} {
  func.func @_grad_loss_kernel(%arg0: i32, %arg1: memref<16x128xf32, #tpu.memory_space<vmem>>, %arg2: memref<16x128xf32, #tpu.memory_space<vmem>>, %arg3: memref<16x128xf32, #tpu.memory_space<vmem>>, %arg4: memref<1x8x128xf32, #tpu.memory_space<vmem>>) attributes {dimension_semantics = [#tpu.dimension_semantics<parallel>], iteration_bounds = array<i64: 2>, scalar_prefetch = 0 : i64, scratch_operands = 0 : i64, tpu.core_type = #tpu.core_type<tc>, window_params = [{transform_indices = @transform_0, window_bounds = array<i64: 16, 128>}, {transform_indices = @transform_1, window_bounds = array<i64: 16, 128>}, {pipeline_mode = #tpu.pipeline_mode<synchronous>, transform_indices = @transform_2, window_bounds = array<i64: 16, 128>}, {transform_indices = @transform_3, window_bounds = array<i64: 1, 8, 128>}]} {
    %c0 = arith.constant 0 : index
    %c0_0 = arith.constant 0 : index
    %0 = vector.load %arg1[%c0, %c0_0] : memref<16x128xf32, #tpu.memory_space<vmem>>, vector<16x128xf32>
    %c0_1 = arith.constant 0 : index
    %c0_2 = arith.constant 0 : index
    %1 = vector.load %arg2[%c0_1, %c0_2] : memref<16x128xf32, #tpu.memory_space<vmem>>, vector<16x128xf32>
    %c1_i32 = arith.constant 1 : i32
    %2 = tpu.dynamic_rotate %0 by %c1_i32 dim 1 : vector<16x128xf32>, i32 -> vector<16x128xf32>
    %c127_i32 = arith.constant 127 : i32
    %3 = tpu.dynamic_rotate %0 by %c127_i32 dim 1 : vector<16x128xf32>, i32 -> vector<16x128xf32>
    %4 = arith.subf %3, %2 : vector<16x128xf32>
    %5 = arith.addf %2, %3 : vector<16x128xf32>
    %cst = arith.constant 2.000000e+00 : f32
    %6 = vector.broadcast %cst : f32 to vector<16x128xf32>
    %7 = arith.mulf %6, %0 : vector<16x128xf32>
    %8 = arith.addf %5, %7 : vector<16x128xf32>
    %c1_i32_3 = arith.constant 1 : i32
    %9 = tpu.dynamic_rotate %4 by %c1_i32_3 dim 0 : vector<16x128xf32>, i32 -> vector<16x128xf32>
    %c15_i32 = arith.constant 15 : i32
    %10 = tpu.dynamic_rotate %4 by %c15_i32 dim 0 : vector<16x128xf32>, i32 -> vector<16x128xf32>
    %11 = arith.addf %9, %10 : vector<16x128xf32>
    %cst_4 = arith.constant 2.000000e+00 : f32
    %12 = vector.broadcast %cst_4 : f32 to vector<16x128xf32>
    %13 = arith.mulf %12, %4 : vector<16x128xf32>
    %14 = arith.addf %11, %13 : vector<16x128xf32>
    %c1_i32_5 = arith.constant 1 : i32
    %15 = tpu.dynamic_rotate %8 by %c1_i32_5 dim 0 : vector<16x128xf32>, i32 -> vector<16x128xf32>
    %c15_i32_6 = arith.constant 15 : i32
    %16 = tpu.dynamic_rotate %8 by %c15_i32_6 dim 0 : vector<16x128xf32>, i32 -> vector<16x128xf32>
    %17 = arith.subf %15, %16 : vector<16x128xf32>
    %c1_i32_7 = arith.constant 1 : i32
    %18 = tpu.dynamic_rotate %1 by %c1_i32_7 dim 1 : vector<16x128xf32>, i32 -> vector<16x128xf32>
    %c127_i32_8 = arith.constant 127 : i32
    %19 = tpu.dynamic_rotate %1 by %c127_i32_8 dim 1 : vector<16x128xf32>, i32 -> vector<16x128xf32>
    %20 = arith.subf %19, %18 : vector<16x128xf32>
    %21 = arith.addf %18, %19 : vector<16x128xf32>
    %cst_9 = arith.constant 2.000000e+00 : f32
    %22 = vector.broadcast %cst_9 : f32 to vector<16x128xf32>
    %23 = arith.mulf %22, %1 : vector<16x128xf32>
    %24 = arith.addf %21, %23 : vector<16x128xf32>
    %c1_i32_10 = arith.constant 1 : i32
    %25 = tpu.dynamic_rotate %20 by %c1_i32_10 dim 0 : vector<16x128xf32>, i32 -> vector<16x128xf32>
    %c15_i32_11 = arith.constant 15 : i32
    %26 = tpu.dynamic_rotate %20 by %c15_i32_11 dim 0 : vector<16x128xf32>, i32 -> vector<16x128xf32>
    %27 = arith.addf %25, %26 : vector<16x128xf32>
    %cst_12 = arith.constant 2.000000e+00 : f32
    %28 = vector.broadcast %cst_12 : f32 to vector<16x128xf32>
    %29 = arith.mulf %28, %20 : vector<16x128xf32>
    %30 = arith.addf %27, %29 : vector<16x128xf32>
    %c1_i32_13 = arith.constant 1 : i32
    %31 = tpu.dynamic_rotate %24 by %c1_i32_13 dim 0 : vector<16x128xf32>, i32 -> vector<16x128xf32>
    %c15_i32_14 = arith.constant 15 : i32
    %32 = tpu.dynamic_rotate %24 by %c15_i32_14 dim 0 : vector<16x128xf32>, i32 -> vector<16x128xf32>
    %33 = arith.subf %31, %32 : vector<16x128xf32>
    %34 = math.absf %14 : vector<16x128xf32>
    %35 = math.absf %30 : vector<16x128xf32>
    %36 = arith.subf %34, %35 : vector<16x128xf32>
    %37 = math.absf %17 : vector<16x128xf32>
    %38 = math.absf %33 : vector<16x128xf32>
    %39 = arith.subf %37, %38 : vector<16x128xf32>
    %40 = arith.mulf %36, %36 : vector<16x128xf32>
    %41 = arith.mulf %39, %39 : vector<16x128xf32>
    %42 = arith.addf %40, %41 : vector<16x128xf32>
    %c0_15 = arith.constant 0 : index
    %c0_16 = arith.constant 0 : index
    %43 = vector.load %arg3[%c0_15, %c0_16] : memref<16x128xf32, #tpu.memory_space<vmem>>, vector<16x128xf32>
    %44 = arith.mulf %42, %43 : vector<16x128xf32>
    %45 = vector.extract_strided_slice %44 {offsets = [0, 0], sizes = [8, 128], strides = [1, 1]} : vector<16x128xf32> to vector<8x128xf32>
    %46 = vector.extract_strided_slice %44 {offsets = [8, 0], sizes = [8, 128], strides = [1, 1]} : vector<16x128xf32> to vector<8x128xf32>
    %47 = arith.addf %45, %46 : vector<8x128xf32>
    %c0_17 = arith.constant 0 : index
    %c0_18 = arith.constant 0 : index
    %c0_19 = arith.constant 0 : index
    %48 = vector.load %arg4[%c0_17, %c0_18, %c0_19] : memref<1x8x128xf32, #tpu.memory_space<vmem>>, vector<1x8x128xf32>
    %49 = vector.shape_cast %48 : vector<1x8x128xf32> to vector<8x128xf32>
    %50 = vector.shape_cast %47 : vector<8x128xf32> to vector<1x8x128xf32>
    tpu.vector_store %arg4[%c0_17, %c0_18, %c0_19], %50 {strides = array<i32>} : memref<1x8x128xf32, #tpu.memory_space<vmem>>, vector<1x8x128xf32>,
    return
  }
  func.func @transform_0(%arg0: i32) -> (i32, i32) {
    %c0_i32 = arith.constant 0 : i32
    %c0_i32_0 = arith.constant 0 : i32
    return %arg0, %c0_i32 : i32, i32
  }
  func.func @transform_1(%arg0: i32) -> (i32, i32) {
    %c0_i32 = arith.constant 0 : i32
    %c0_i32_0 = arith.constant 0 : i32
    return %arg0, %c0_i32 : i32, i32
  }
  func.func @transform_2(%arg0: i32) -> (i32, i32) {
    %c0_i32 = arith.constant 0 : i32
    %c0_i32_0 = arith.constant 0 : i32
    %c0_i32_1 = arith.constant 0 : i32
    return %c0_i32, %c0_i32_0 : i32, i32
  }
  func.func @transform_3(%arg0: i32) -> (i32, i32, i32) {
    %c0_i32 = arith.constant 0 : i32
    %c0_i32_0 = arith.constant 0 : i32
    %c0_i32_1 = arith.constant 0 : i32
    return %arg0, %c0_i32, %c0_i32_0 : i32, i32, i32
  }
}

</mosaic_0001>

<llo_original>
// kernel: grad_loss.1
$region0: #{grad_loss.1}
  #allocation0 [shape = 'u32[]', space=smem, size = 0x4, offset = 0x4, fixed_abs, tag = 'smem constant byte address 0x4 - core index']
  #allocation1 [shape = 'u32[144,128]{1,0:T(1,128)}', space=vmem, size = 0x12000, scoped, tag = 'internal scratch']
  %s0 = inlined_call_operand.vmem [shape: f32[32,128], index: 0, kind: input, shape index: {}]
  %s1 = inlined_call_operand.vmem [shape: f32[32,128], index: 1, kind: input, shape index: {}]
  %s2 = inlined_call_operand.vmem [shape: f32[16,128], index: 2, kind: input, shape index: {}]
  %s3 = inlined_call_operand.vmem [shape: f32[2,8,128], index: 3, kind: output, shape index: {}]
  %s4 = sld [smem:[#allocation0]]
  $region45: #{grad_loss.1} parent=0
    _
  %s6 = ssub.s32 1, %s4
  %s7 = scalar_select 0, %s6, %s4
  loop: start=0, step=1, limit=4
  $region2: #{grad_loss.1} parent=0 // loop_pre_header
    _
  $region3: #{grad_loss.1} parent=0 // loop_header
    %s9 = sphi 0, %s13
    %p10 = scmp.ge.s32.totalorder %s9, 4
    %s19 = sphi 0, %s21
    %s22 = sphi 0, %s19
    %s23 = sphi 0, %s22
    %s39 = sphi 0, %s23
    %s45 = sphi 0, %s47
    %s48 = sphi 0, %s45
    %s49 = sphi 0, %s48
    %s65 = sphi 0, %s49
    %s69 = sphi 0, %s69
    %s71 = sphi 0, %s69
    %s72 = sphi 0, %s71
    %s86 = sphi 0, %s72
    %s92 = sphi 0, %s94
    %s95 = sphi 0, %s92
    %s96 = sphi 0, %s95
    %s112 = sphi 0, %s96
  $region4: #{grad_loss.1} parent=0 // loop_header_branch
    %12 = sbr.rel (%p10) target = $region8
  $region5: #{grad_loss.1} parent=0 // loop_body
    %s14 = ssub.s32 %s9, 1
    %s15 = ssub.s32 %s9, 2
    %s16 = sadd.s32 %s9, 1
    %s17 = ssub.s32 %s9, %s16
    %p18 = scmp.eq.s32.totalorder %s17, 0
    %s20 = sadd.s32 %s19, 1
    %s21 = scalar_select %p18, %s19, %s20
    %p24 = pneg %p18
    %p25 = scmp.eq.s32.totalorder %s9, 1
    %p26 = por %p24, %p25
    %p27 = scmp.ne.s32.totalorder %s19, %s22
    %p28 = scmp.eq.s32.totalorder %s9, 0
    %p29 = por %p27, %p28
    %p30 = scmp.ne.s32.totalorder %s19, %s22
    %p31 = scmp.eq.s32.totalorder %s14, 1
    %p32 = por %p30, %p31
    %p33 = scmp.ne.s32.totalorder %s22, %s23
    %p34 = scmp.eq.s32.totalorder %s14, 0
    %p35 = por %p33, %p34
    %p36 = scmp.ne.s32.totalorder %s22, %s23
    %p37 = scmp.eq.s32.totalorder %s15, 1
    %p38 = por %p36, %p37
    %p40 = scmp.ne.s32.totalorder %s23, %s39
    %p41 = scmp.eq.s32.totalorder %s15, 0
    %p42 = por %p40, %p41
    %s43 = ssub.s32 %s9, %s16
    %p44 = scmp.eq.s32.totalorder %s43, 0
    %s46 = sadd.s32 %s45, 1
    %s47 = scalar_select %p44, %s45, %s46
    %p50 = pneg %p44
    %p51 = scmp.eq.s32.totalorder %s9, 1
    %p52 = por %p50, %p51
    %p53 = scmp.ne.s32.totalorder %s45, %s48
    %p54 = scmp.eq.s32.totalorder %s9, 0
    %p55 = por %p53, %p54
    %p56 = scmp.ne.s32.totalorder %s45, %s48
    %p57 = scmp.eq.s32.totalorder %s14, 1
    %p58 = por %p56, %p57
    %p59 = scmp.ne.s32.totalorder %s48, %s49
    %p60 = scmp.eq.s32.totalorder %s14, 0
    %p61 = por %p59, %p60
    %p62 = scmp.ne.s32.totalorder %s48, %s49
    %p63 = scmp.eq.s32.totalorder %s15, 1
    %p64 = por %p62, %p63
    %p66 = scmp.ne.s32.totalorder %s49, %s65
    %p67 = scmp.eq.s32.totalorder %s15, 0
    %p68 = por %p66, %p67
    %s70 = sadd.s32 %s69, 1
    %p73 = scmp.eq.s32.totalorder %s9, 1
    %p74 = scmp.ne.s32.totalorder %s69, %s71
    %p75 = scmp.eq.s32.totalorder %s9, 0
    %p76 = por %p74, %p75
    %p77 = scmp.ne.s32.totalorder %s69, %s71
    %p78 = scmp.eq.s32.totalorder %s14, 1
    %p79 = por %p77, %p78
    %p80 = scmp.ne.s32.totalorder %s71, %s72
    %p81 = scmp.eq.s32.totalorder %s14, 0
    %p82 = por %p80, %p81
    %p83 = scmp.ne.s32.totalorder %s71, %s72
    %p84 = scmp.eq.s32.totalorder %s15, 1
    %p85 = por %p83, %p84
    %p87 = scmp.ne.s32.totalorder %s72, %s86
    %p88 = scmp.eq.s32.totalorder %s15, 0
    %p89 = por %p87, %p88
    %s90 = ssub.s32 %s9, %s16
    %p91 = scmp.eq.s32.totalorder %s90, 0
    %s93 = sadd.s32 %s92, 1
    %s94 = scalar_select %p91, %s92, %s93
    %p97 = pneg %p91
    %p98 = scmp.eq.s32.totalorder %s9, 1
    %p99 = por %p97, %p98
    %p100 = scmp.ne.s32.totalorder %s92, %s95
    %p101 = scmp.eq.s32.totalorder %s9, 0
    %p102 = por %p100, %p101
    %p103 = scmp.ne.s32.totalorder %s92, %s95
    %p104 = scmp.eq.s32.totalorder %s14, 1
    %p105 = por %p103, %p104
    %p106 = scmp.ne.s32.totalorder %s95, %s96
    %p107 = scmp.eq.s32.totalorder %s14, 0
    %p108 = por %p106, %p107
    %p109 = scmp.ne.s32.totalorder %s95, %s96
    %p110 = scmp.eq.s32.totalorder %s15, 1
    %p111 = por %p109, %p110
    %p113 = scmp.ne.s32.totalorder %s96, %s112
    %p114 = scmp.eq.s32.totalorder %s15, 0
    %p115 = por %p113, %p114
    %p116 = scmp.le.s32.totalorder 1, %s9
    %p117 = scmp.lt.s32.totalorder %s9, 3
    %p118 = pnand %p116, %p117
    %p119 = pneg %p118
    // Predicated region
    $region9: #{grad_loss.1} parent=5 // pred_check
      _
    $region10: #{grad_loss.1} parent=5 // pred_check_branch
      %121 = sbr.rel (%p118) target = $region12
    $region11: #{grad_loss.1} parent=5 // pred_region
      %s122 = ssub.s32 %s9, 1
      // Predicated region
      $region13: #{grad_loss.1} parent=11 // pred_check
        %p123 = pneg %p82
      $region14: #{grad_loss.1} parent=11 // pred_check_branch
        %125 = sbr.rel (%p123) target = $region16
      $region15: #{grad_loss.1} parent=11 // pred_region
        _
      $region16: #{grad_loss.1} parent=11 // pred_fallthru
        _
    $region12: #{grad_loss.1} parent=5 // pred_fallthru
      _
    %p126 = scmp.lt.s32.totalorder %s9, 2
    // Predicated region
    $region17: #{grad_loss.1} parent=5 // pred_check
      %p127 = pneg %p126
    $region18: #{grad_loss.1} parent=5 // pred_check_branch
      %129 = sbr.rel (%p127) target = $region20
    $region19: #{grad_loss.1} parent=5 // pred_region
      // Predicated region
      $region21: #{grad_loss.1} parent=19 // pred_check
        %p130 = pneg %p29
      $region22: #{grad_loss.1} parent=19 // pred_check_branch
        %132 = sbr.rel (%p130) target = $region24
      $region23: #{grad_loss.1} parent=19 // pred_region
        %s133 = smul.u32 2, %s9
        %p134 = scmp.lt.s32.totalorder %s133, 3
        %s135 = scalar_select %p134, %s133, 3
        %s136 = smul.addr %s135, 8
        %s137 = scalar_lea.vmem %s0, %s136
        %s138 = smul.u32 2, %s9
      $region24: #{grad_loss.1} parent=19 // pred_fallthru
        _
      // Predicated region
      $region25: #{grad_loss.1} parent=19 // pred_check
        %p139 = pneg %p55
      $region26: #{grad_loss.1} parent=19 // pred_check_branch
        %141 = sbr.rel (%p139) target = $region28
      $region27: #{grad_loss.1} parent=19 // pred_region
        %s142 = smul.u32 2, %s9
        %p143 = scmp.lt.s32.totalorder %s142, 3
        %s144 = scalar_select %p143, %s142, 3
        %s145 = smul.addr %s144, 8
        %s146 = scalar_lea.vmem %s1, %s145
        %s147 = smul.u32 2, %s9
      $region28: #{grad_loss.1} parent=19 // pred_fallthru
        _
    $region20: #{grad_loss.1} parent=5 // pred_fallthru
      _
    %p148 = scmp.le.s32.totalorder 1, %s9
    %p149 = scmp.lt.s32.totalorder %s9, 3
    %p150 = pnand %p148, %p149
    %p151 = pneg %p150
    // Predicated region
    $region29: #{grad_loss.1} parent=5 // pred_check
      _
    $region30: #{grad_loss.1} parent=5 // pred_check_branch
      %153 = sbr.rel (%p150) target = $region32
    $region31: #{grad_loss.1} parent=5 // pred_region
      %s154 = ssub.s32 %s9, 1
      %s155 = smul.u32 2, %s14
      %p156 = scmp.lt.s32.totalorder %s155, 3
      %s157 = scalar_select %p156, %s155, 3
      %s158 = smul.addr %s157, 8
      %s159 = scalar_lea.vmem %s0, %s158
      %p160 = pneg %p35
      %p161 = pneg %p32
      %s162 = smul.u32 2, %s14
      %p163 = scmp.lt.s32.totalorder %s162, 3
      %s164 = scalar_select %p163, %s162, 3
      %s165 = smul.addr %s164, 8
      %s166 = scalar_lea.vmem %s1, %s165
      %p167 = pneg %p61
      %p168 = pneg %p58
      %p169 = pneg %p82
      %p170 = pneg %p79
      %p171 = pneg %p108
      %p172 = pneg %p105
      %p173 = scmp.lt.s32.totalorder %s14, 1
      %s174 = scalar_select %p173, %s14, 1
      %s175 = smul.addr %s174, 8
      %s176 = scalar_lea.vmem %s3, %s175
      %s177 = smul.u32 2, %s14
      %p178 = scmp.lt.s32.totalorder %s177, 3
      %s179 = scalar_select %p178, %s177, 3
      %s180 = smul.addr %s179, 8
      %s181 = scalar_lea.vmem %s0, %s180
      %s182 = smul.u32 2, %s14
      %s183 = smul.u32 2, %s14
      %p184 = scmp.lt.s32.totalorder %s183, 3
      %s185 = scalar_select %p184, %s183, 3
      %s186 = smul.addr %s185, 8
      %s187 = scalar_lea.vmem %s1, %s186
      %s188 = smul.u32 2, %s14
      %p189 = scmp.lt.s32.totalorder %s14, 1
      %s190 = scalar_select %p189, %s14, 1
      %s191 = smul.addr %s190, 8
      %s192 = scalar_lea.vmem %s3, %s191
      %v193 = vld [vmem:[%s181] sm:$0xff]
      %v194 = vld [vmem:[%s181 + $0x8] sm:$0xff]
      %v195 = vld [vmem:[%s187] sm:$0xff]
      %v196 = vld [vmem:[%s187 + $0x8] sm:$0xff]
      %197 = vrot.lane.b32.xlu0 %v193, 1
      %v198 = vpop.permute.xlu0 %197
      %199 = vrot.lane.b32.xlu0 %v194, 1
      %v200 = vpop.permute.xlu0 %199
      %201 = vrot.lane.b32.xlu0 %v193, 127
      %v202 = vpop.permute.xlu0 %201
      %203 = vrot.lane.b32.xlu0 %v194, 127
      %v204 = vpop.permute.xlu0 %203
      %v205 = vsub.f32 %v202, %v198
      %v206 = vsub.f32 %v204, %v200
      %v207 = vadd.f32 %v198, %v202
      %v208 = vadd.f32 %v200, %v204
      %v209 = vmul.f32 %v193, 2.0
      %v210 = vmul.f32 %v194, 2.0
      %v211 = vadd.f32 %v207, %v209
      %v212 = vadd.f32 %v208, %v210
      %v213 = vrot.slane %v205, 7
      %v214 = vrot.slane %v206, 7
      %v215 = vlaneseq
      %v216 = vshrl.u32 %v215, 7
      %vm217 = vcmp.lt.s32.totalorder %v216, 1
      %v218 = vsel %vm217, %v213, %v214
      %v219 = vsel %vm217, %v214, %v213
      %v220 = vrot.slane %v205, 1
      %v221 = vrot.slane %v206, 1
      %vm222 = vcmp.lt.s32.totalorder %v216, 7
      %v223 = vsel %vm222, %v220, %v221
      %v224 = vsel %vm222, %v221, %v220
      %v225 = vadd.f32 %v219, %v223
      %v226 = vadd.f32 %v218, %v224
      %v227 = vmul.f32 %v205, 2.0
      %v228 = vmul.f32 %v206, 2.0
      %v229 = vadd.f32 %v225, %v227
      %v230 = vadd.f32 %v226, %v228
      %v231 = vrot.slane %v211, 7
      %v232 = vrot.slane %v212, 7
      %v233 = vsel %vm217, %v231, %v232
      %v234 = vsel %vm217, %v232, %v231
      %v235 = vrot.slane %v211, 1
      %v236 = vrot.slane %v212, 1
      %v237 = vsel %vm222, %v235, %v236
      %v238 = vsel %vm222, %v236, %v235
      %v239 = vsub.f32 %v234, %v237
      %v240 = vsub.f32 %v233, %v238
      %241 = vrot.lane.b32.xlu0 %v195, 1
      %v242 = vpop.permute.xlu0 %241
      %243 = vrot.lane.b32.xlu0 %v196, 1
      %v244 = vpop.permute.xlu0 %243
      %245 = vrot.lane.b32.xlu0 %v195, 127
      %v246 = vpop.permute.xlu0 %245
      %247 = vrot.lane.b32.xlu0 %v196, 127
      %v248 = vpop.permute.xlu0 %247
      %v249 = vsub.f32 %v246, %v242
      %v250 = vsub.f32 %v248, %v244
      %v251 = vadd.f32 %v242, %v246
      %v252 = vadd.f32 %v244, %v248
      %v253 = vmul.f32 %v195, 2.0
      %v254 = vmul.f32 %v196, 2.0
      %v255 = vadd.f32 %v251, %v253
      %v256 = vadd.f32 %v252, %v254
      %v257 = vrot.slane %v249, 7
      %v258 = vrot.slane %v250, 7
      %v259 = vsel %vm217, %v257, %v258
      %v260 = vsel %vm217, %v258, %v257
      %v261 = vrot.slane %v249, 1
      %v262 = vrot.slane %v250, 1
      %v263 = vsel %vm222, %v261, %v262
      %v264 = vsel %vm222, %v262, %v261
      %v265 = vadd.f32 %v260, %v263
      %v266 = vadd.f32 %v259, %v264
      %v267 = vmul.f32 %v249, 2.0
      %v268 = vmul.f32 %v250, 2.0
      %v269 = vadd.f32 %v265, %v267
      %v270 = vadd.f32 %v266, %v268
      %v271 = vrot.slane %v255, 7
      %v272 = vrot.slane %v256, 7
      %v273 = vsel %vm217, %v271, %v272
      %v274 = vsel %vm217, %v272, %v271
      %v275 = vrot.slane %v255, 1
      %v276 = vrot.slane %v256, 1
      %v277 = vsel %vm222, %v275, %v276
      %v278 = vsel %vm222, %v276, %v275
      %v279 = vsub.f32 %v274, %v277
      %v280 = vsub.f32 %v273, %v278
      %v281 = vand.u32 2147483647, %v229
      %v282 = vand.u32 2147483647, %v230
      %v283 = vand.u32 2147483647, %v269
      %v284 = vand.u32 2147483647, %v270
      %v285 = vsub.f32 %v281, %v283
      %v286 = vsub.f32 %v282, %v284
      %v287 = vand.u32 2147483647, %v239
      %v288 = vand.u32 2147483647, %v240
      %v289 = vand.u32 2147483647, %v279
      %v290 = vand.u32 2147483647, %v280
      %v291 = vsub.f32 %v287, %v289
      %v292 = vsub.f32 %v288, %v290
      %v293 = vmul.f32 %v285, %v285
      %v294 = vmul.f32 %v286, %v286
      %v295 = vmul.f32 %v291, %v291
      %v296 = vmul.f32 %v292, %v292
      %v297 = vadd.f32 %v293, %v295
      %v298 = vadd.f32 %v294, %v296
      %v299 = vld [vmem:[%s2] sm:$0xff]
      %v300 = vld [vmem:[%s2 + $0x8] sm:$0xff]
      %v301 = vmul.f32 %v297, %v299
      %v302 = vmul.f32 %v298, %v300
      %v303 = vadd.f32 %v301, %v302
      %304 = vst [vmem:[%s192] sm:$0xff] %v303
      %p305 = scmp.lt.s32.totalorder %s14, 1
      %s306 = scalar_select %p305, %s14, 1
      %s307 = smul.addr %s306, 8
      %s308 = scalar_lea.vmem %s3, %s307
      // Predicated region
      $region33: #{grad_loss.1} parent=31 // pred_check
        %p309 = pneg %p105
      $region34: #{grad_loss.1} parent=31 // pred_check_branch
        %311 = sbr.rel (%p309) target = $region36
      $region35: #{grad_loss.1} parent=31 // pred_region
        _
      $region36: #{grad_loss.1} parent=31 // pred_fallthru
        _
    $region32: #{grad_loss.1} parent=5 // pred_fallthru
      _
    %p312 = scmp.le.s32.totalorder 2, %s9
    // Predicated region
    $region37: #{grad_loss.1} parent=5 // pred_check
      %p313 = pneg %p312
    $region38: #{grad_loss.1} parent=5 // pred_check_branch
      %315 = sbr.rel (%p313) target = $region40
    $region39: #{grad_loss.1} parent=5 // pred_region
      %s316 = ssub.s32 %s9, 2
      // Predicated region
      $region41: #{grad_loss.1} parent=39 // pred_check
        %p317 = pneg %p111
      $region42: #{grad_loss.1} parent=39 // pred_check_branch
        %319 = sbr.rel (%p317) target = $region44
      $region43: #{grad_loss.1} parent=39 // pred_region
        %p320 = scmp.lt.s32.totalorder %s15, 1
        %s321 = scalar_select %p320, %s15, 1
        %s322 = smul.addr %s321, 8
        %s323 = scalar_lea.vmem %s3, %s322
      $region44: #{grad_loss.1} parent=39 // pred_fallthru
        _
    $region40: #{grad_loss.1} parent=5 // pred_fallthru
      _
  $region6: #{grad_loss.1} parent=0 // loop_footer
    %s13 = sadd.s32 1, %s9
  $region7: #{grad_loss.1} parent=0 // loop_footer_branch
    %8 = sbr.rel target = $region3
  $region8: #{grad_loss.1} parent=0 // loop_exit
    _

</llo_original>
